<compile_context>
chip_gen: v6e
topology: v6e:2x2x1
jax: 0.10.0
libtpu: 0.0.40
codegen_flags: <defaults>
</compile_context>

<pallas_src>
import functools

import jax
import jax.numpy as jnp
import numpy as np
from jax.experimental import pallas as pl
from jax.experimental.pallas import tpu as pltpu


def _grad_loss_kernel(w_ref, gt_ref, cur_ref, out_ref, *, width):
    """One block = `tr` flattened (b,c) images, each a row of length H*W."""
    hw = gt_ref.shape[1]
    # Gradient of the difference == difference of the gradients.
    d = gt_ref[...].astype(jnp.float32) - cur_ref[...].astype(jnp.float32)

    # pltpu.roll follows np.roll semantics: a positive shift of (hw - k) brings
    # element i+k to position i (rolls are per-row along the lane axis).
    if hw > 1:
        ddx = pltpu.roll(d, hw - 1, 1) - d          # d[i+1] - d[i]  (neighbour along W)
    else:
        ddx = jnp.zeros_like(d)
    if width < hw:
        ddy = pltpu.roll(d, hw - width, 1) - d      # d[i+W] - d[i]  (neighbour along H)
    else:
        ddy = jnp.zeros_like(d)

    dx_w = w_ref[0:1, :]   # 0/1 weights: zero where w == W-1 (last column)
    dy_w = w_ref[1:2, :]   # 0/1 weights: zero where h == H-1 (last row)
    contrib = jnp.abs(ddx) * dx_w + jnp.abs(ddy) * dy_w

    # One partial sum per grid step; grand total + mean are done in the wrapper.
    out_ref[...] = jnp.zeros_like(out_ref) + jnp.sum(contrib)


def _pick_row_tile(rows, hw, itemsize, max_block_bytes=4 * 1024 * 1024):
    """Largest divisor of `rows` whose input block fits the VMEM budget (prefer x8)."""
    if rows * hw * itemsize <= max_block_bytes:
        return rows
    max_rows = max(1, max_block_bytes // (hw * itemsize))
    divisors = [t for t in range(1, max_rows + 1) if rows % t == 0]
    mult8 = [t for t in divisors if t % 8 == 0]
    return (mult8 or divisors)[-1]


def grad_loss(x_gt, x_curr):
    assert x_gt.shape == x_curr.shape, \
        "x_gt and x_curr must to be of the same dimensions"
    B, C, H, W = x_gt.shape
    rows, hw = B * C, H * W

    # Lane-dense layout: one (b, c) image per row of length H*W (free reshape).
    gt2 = x_gt.reshape(rows, hw)
    cur2 = x_curr.reshape(rows, hw)

    # 0/1 boundary weights (row 0: "not last column" for dx, row 1: "not last row" for dy).
    flat = np.arange(hw)
    weights = jnp.asarray(
        np.stack([(flat % W) < (W - 1), flat < (H - 1) * W]).astype(np.float32))

    itemsize = x_gt.dtype.itemsize
    tr = _pick_row_tile(rows, hw, itemsize)
    # TODO(synk): for very large single images (H*W*itemsize > ~4 MiB) also tile the
    # flattened lane axis (needs halo handling for the roll-by-W neighbour).
    grid = (rows // tr,)

    n = B * C * H * W
    cost = pl.CostEstimate(
        flops=9 * n,
        transcendentals=0,
        bytes_accessed=2 * n * itemsize + weights.size * 4 + grid[0] * 4)

    block_bytes = tr * hw * itemsize
    vmem_limit = int(min(100 * 1024 * 1024,
                         max(32 * 1024 * 1024,
                             5 * block_bytes + 2 * hw * 4 + (1 << 20))))

    partials = pl.pallas_call(
        functools.partial(_grad_loss_kernel, width=W),
        out_shape=jax.ShapeDtypeStruct((grid[0], 1, 1), jnp.float32),
        grid_spec=pltpu.PrefetchScalarGridSpec(
            num_scalar_prefetch=0,
            grid=grid,
            in_specs=[
                pl.BlockSpec((2, hw), lambda i: (0, 0)),    # boundary weights (resident)
                pl.BlockSpec((tr, hw), lambda i: (i, 0)),   # gt rows
                pl.BlockSpec((tr, hw), lambda i: (i, 0)),   # curr rows
            ],
            out_specs=pl.BlockSpec((1, 1, 1), lambda i: (i, 0, 0)),
        ),
        compiler_params=pltpu.CompilerParams(
            dimension_semantics=("parallel",),   # disjoint outputs, no cross-step state
            vmem_limit_bytes=vmem_limit),
        cost_estimate=cost,
    )(weights, gt2, cur2)

    # mean over (b, c) of per-(b,c) L1 norms == grand total / (B*C)
    return jnp.sum(partials) / (B * C)


def grad_loss_ref(x_gt, x_curr):
    """Pure-JAX reference matching the PyTorch module."""
    def grads(x):
        dy = jnp.pad(x[:, :, 1:, :] - x[:, :, :-1, :],
                     ((0, 0), (0, 0), (0, 1), (0, 0)))
        dx = jnp.pad(x[:, :, :, 1:] - x[:, :, :, :-1],
                     ((0, 0), (0, 0), (0, 0), (0, 1)))
        return dy, dx
    dy_g, dx_g = grads(x_gt)
    dy_c, dx_c = grads(x_curr)
    n = lambda t: jnp.sum(jnp.abs(t), axis=(2, 3))
    return jnp.mean(n(dy_g - dy_c) + n(dx_g - dx_c))


if __name__ == "__main__":
    key = jax.random.PRNGKey(0)
    k1, k2 = jax.random.split(key)
    B, C, H, W = 2, 4, 16, 16
    x_gt = jax.random.normal(k1, (B, C, H, W), dtype=jnp.float32)
    x_curr = jax.random.normal(k2, (B, C, H, W), dtype=jnp.float32)

    loss = grad_loss(x_gt, x_curr)
    jax.block_until_ready(loss)

    ref = grad_loss_ref(x_gt, x_curr)
    np.testing.assert_allclose(np.asarray(loss), np.asarray(ref),
                               rtol=1e-5, atol=1e-5)

    print("KERNEL_OK")
</pallas_src>

<mosaic_0001>
module attributes {stable_mosaic.version = 11 : i64} {
  func.func @_grad_loss_kernel(%arg0: i32, %arg1: memref<2x256xf32, #tpu.memory_space<vmem>>, %arg2: memref<8x256xf32, #tpu.memory_space<vmem>>, %arg3: memref<8x256xf32, #tpu.memory_space<vmem>>, %arg4: memref<1x1x1xf32, #tpu.memory_space<vmem>>) attributes {dimension_semantics = [#tpu.dimension_semantics<parallel>], iteration_bounds = array<i64: 1>, scalar_prefetch = 0 : i64, scratch_operands = 0 : i64, tpu.core_type = #tpu.core_type<tc>, window_params = [{pipeline_mode = #tpu.pipeline_mode<synchronous>, transform_indices = @transform_0, window_bounds = array<i64: 2, 256>}, {transform_indices = @transform_1, window_bounds = array<i64: 8, 256>}, {transform_indices = @transform_2, window_bounds = array<i64: 8, 256>}, {transform_indices = @transform_3, window_bounds = array<i64: 1, 1, 1>}]} {
    %c0 = arith.constant 0 : index
    %c0_0 = arith.constant 0 : index
    %0 = vector.load %arg2[%c0, %c0_0] : memref<8x256xf32, #tpu.memory_space<vmem>>, vector<8x256xf32>
    %c0_1 = arith.constant 0 : index
    %c0_2 = arith.constant 0 : index
    %1 = vector.load %arg3[%c0_1, %c0_2] : memref<8x256xf32, #tpu.memory_space<vmem>>, vector<8x256xf32>
    %2 = arith.subf %0, %1 : vector<8x256xf32>
    %c255_i32 = arith.constant 255 : i32
    %3 = tpu.dynamic_rotate %2 by %c255_i32 dim 1 : vector<8x256xf32>, i32 -> vector<8x256xf32>
    %4 = arith.subf %3, %2 : vector<8x256xf32>
    %c240_i32 = arith.constant 240 : i32
    %5 = tpu.dynamic_rotate %2 by %c240_i32 dim 1 : vector<8x256xf32>, i32 -> vector<8x256xf32>
    %6 = arith.subf %5, %2 : vector<8x256xf32>
    %c0_3 = arith.constant 0 : index
    %c0_4 = arith.constant 0 : index
    %7 = vector.load %arg1[%c0_3, %c0_4] : memref<2x256xf32, #tpu.memory_space<vmem>>, vector<1x256xf32>
    %c1 = arith.constant 1 : index
    %c0_5 = arith.constant 0 : index
    %8 = vector.load %arg1[%c1, %c0_5] : memref<2x256xf32, #tpu.memory_space<vmem>>, vector<1x256xf32>
    %9 = math.absf %4 : vector<8x256xf32>
    %10 = vector.broadcast %7 : vector<1x256xf32> to vector<8x256xf32>
    %11 = arith.mulf %9, %10 : vector<8x256xf32>
    %12 = math.absf %6 : vector<8x256xf32>
    %13 = vector.broadcast %8 : vector<1x256xf32> to vector<8x256xf32>
    %14 = arith.mulf %12, %13 : vector<8x256xf32>
    %15 = arith.addf %11, %14 : vector<8x256xf32>
    %cst = arith.constant 0.000000e+00 : f32
    %16 = vector.broadcast %cst : f32 to vector<1x1x1xf32>
    %17 = vector.shape_cast %15 : vector<8x256xf32> to vector<1x8x256xf32>
    %cst_6 = arith.constant dense<0.000000e+00> : vector<1xf32>
    %18 = vector.multi_reduction <add>, %17, %cst_6 [1, 2] : vector<1x8x256xf32> to vector<1xf32>
    %19 = vector.shape_cast %18 : vector<1xf32> to vector<1x1x1xf32>
    %20 = vector.extract %19[0, 0, 0] : f32 from vector<1x1x1xf32>
    %21 = vector.broadcast %20 : f32 to vector<1x1x1xf32>
    %22 = arith.addf %16, %21 : vector<1x1x1xf32>
    %c0_7 = arith.constant 0 : index
    %c0_8 = arith.constant 0 : index
    %c0_9 = arith.constant 0 : index
    %23 = vector.load %arg4[%c0_7, %c0_8, %c0_9] : memref<1x1x1xf32, #tpu.memory_space<vmem>>, vector<1x1x1xf32>
    tpu.vector_store %arg4[%c0_7, %c0_8, %c0_9], %22 {strides = array<i32>} : memref<1x1x1xf32, #tpu.memory_space<vmem>>, vector<1x1x1xf32>,
    return
  }
  func.func @transform_0(%arg0: i32) -> (i32, i32) {
    %c0_i32 = arith.constant 0 : i32
    %c0_i32_0 = arith.constant 0 : i32
    %c0_i32_1 = arith.constant 0 : i32
    return %c0_i32, %c0_i32_0 : i32, i32
  }
  func.func @transform_1(%arg0: i32) -> (i32, i32) {
    %c0_i32 = arith.constant 0 : i32
    %c0_i32_0 = arith.constant 0 : i32
    return %arg0, %c0_i32 : i32, i32
  }
  func.func @transform_2(%arg0: i32) -> (i32, i32) {
    %c0_i32 = arith.constant 0 : i32
    %c0_i32_0 = arith.constant 0 : i32
    return %arg0, %c0_i32 : i32, i32
  }
  func.func @transform_3(%arg0: i32) -> (i32, i32, i32) {
    %c0_i32 = arith.constant 0 : i32
    %c0_i32_0 = arith.constant 0 : i32
    %c0_i32_1 = arith.constant 0 : i32
    return %arg0, %c0_i32, %c0_i32_0 : i32, i32, i32
  }
}

</mosaic_0001>

<llo_original>
// kernel: tpu_custom_call.1
$region0: #{tpu_custom_call.1}
  #allocation0 [shape = 'u32[]', space=smem, size = 0x4, offset = 0x4, fixed_abs, tag = 'smem constant byte address 0x4 - core index']
  #allocation1 [shape = 'u32[144,128]{1,0:T(1,128)}', space=vmem, size = 0x12000, scoped, tag = 'internal scratch']
  %s0 = inlined_call_operand.hbm [shape: f32[2,256], index: 0, kind: input, shape index: {}]
  %s1 = inlined_call_operand.hbm [shape: f32[8,256], index: 1, kind: input, shape index: {}]
  %s2 = inlined_call_operand.hbm [shape: f32[8,256], index: 2, kind: input, shape index: {}]
  %s3 = inlined_call_operand.hbm [shape: f32[1,1,1], index: 3, kind: output, shape index: {}]
  %s4 = sld [smem:[#allocation0]]
  $region34: #{tpu_custom_call.1} parent=0
    _
  %s6 = ssub.s32 1, %s4
  %s7 = scalar_select 0, %s6, %s4
  $region1: #{tpu_custom_call.1} parent=0
    #allocation2 [shape = 'u8[2048]{0}', space=vmem, size = 0x800, scoped, tag = 'input window, operand 0, single buffered']
    #allocation3 [shape = 's32[1]{0}', space=sflag, size = 0x4, scoped, tag = 'scoped memory for tpu_custom_call.1']
    #allocation4 [shape = 's32[1]{0}', space=sflag, size = 0x4, scoped, tag = 'scoped memory for tpu_custom_call.1']
    #allocation5 [shape = 'u8[8192]{0}', space=vmem, size = 0x2000, scoped, tag = 'input window, operand 1, single buffered']
    #allocation6 [shape = 's32[1]{0}', space=sflag, size = 0x4, scoped, tag = 'scoped memory for tpu_custom_call.1']
    #allocation7 [shape = 'u8[8192]{0}', space=vmem, size = 0x2000, scoped, tag = 'input window, operand 2, single buffered']
    #allocation8 [shape = 'u8[512]{0}', space=vmem, size = 0x400, scoped, tag = 'output window, operand 0, single buffered']
    %8 = vsyncpa [#allocation3], 0
    %9 = vsyncpa [#allocation6], 0
    %10 = vsyncpa [#allocation4], 0
    // Predicated region
    $region2: #{tpu_custom_call.1} parent=1 // pred_check
      _
    $region3: #{tpu_custom_call.1} parent=1 // pred_check_branch
      %12 = sbr.rel (0) target = $region5
    $region4: #{tpu_custom_call.1} parent=1 // pred_region
      %s14 = ssub.s32 64, 64
      %15 = vsyncadd [#allocation3], %s14
      %s17 = sshll.u32 [#allocation2], 4
      %s18 = int_to_ptr.vmem [resolvable:$true] %s17
      %20 = dma.hbm_to_vmem [thread:$0]  %s0, 64, %s18, [#allocation3]
    $region5: #{tpu_custom_call.1} parent=1 // pred_fallthru
      _
    // Predicated region
    $region6: #{tpu_custom_call.1} parent=1 // pred_check
      _
    $region7: #{tpu_custom_call.1} parent=1 // pred_check_branch
      %22 = sbr.rel (0) target = $region9
    $region8: #{tpu_custom_call.1} parent=1 // pred_region
      %s24 = ssub.s32 256, 256
      %25 = vsyncadd [#allocation6], %s24
      %s27 = sshll.u32 [#allocation5], 4
      %s28 = int_to_ptr.vmem [resolvable:$true] %s27
      %30 = dma.hbm_to_vmem [thread:$0]  %s1, 256, %s28, [#allocation6]
    $region9: #{tpu_custom_call.1} parent=1 // pred_fallthru
      _
    // Predicated region
    $region10: #{tpu_custom_call.1} parent=1 // pred_check
      _
    $region11: #{tpu_custom_call.1} parent=1 // pred_check_branch
      %32 = sbr.rel (0) target = $region13
    $region12: #{tpu_custom_call.1} parent=1 // pred_region
      %s34 = ssub.s32 256, 256
      %35 = vsyncadd [#allocation6], %s34
      %s37 = sshll.u32 [#allocation7], 4
      %s38 = int_to_ptr.vmem [resolvable:$true] %s37
      %40 = dma.hbm_to_vmem [thread:$0]  %s2, 256, %s38, [#allocation6]
    $region13: #{tpu_custom_call.1} parent=1 // pred_fallthru
      _
    // Predicated region
    $region14: #{tpu_custom_call.1} parent=1 // pred_check
      _
    $region15: #{tpu_custom_call.1} parent=1 // pred_check_branch
      %42 = sbr.rel (0) target = $region17
    $region16: #{tpu_custom_call.1} parent=1 // pred_region
      %43 = dma.done [#allocation3], 64
    $region17: #{tpu_custom_call.1} parent=1 // pred_fallthru
      _
    // Predicated region
    $region18: #{tpu_custom_call.1} parent=1 // pred_check
      _
    $region19: #{tpu_custom_call.1} parent=1 // pred_check_branch
      %45 = sbr.rel (0) target = $region21
    $region20: #{tpu_custom_call.1} parent=1 // pred_region
      %46 = dma.done [#allocation6], 256
    $region21: #{tpu_custom_call.1} parent=1 // pred_fallthru
      _
    // Predicated region
    $region22: #{tpu_custom_call.1} parent=1 // pred_check
      _
    $region23: #{tpu_custom_call.1} parent=1 // pred_check_branch
      %48 = sbr.rel (0) target = $region25
    $region24: #{tpu_custom_call.1} parent=1 // pred_region
      %49 = dma.done [#allocation6], 256
    $region25: #{tpu_custom_call.1} parent=1 // pred_fallthru
      _
    %v50 = vld [vmem:[#allocation5] sm:$0xff]
    %v51 = vld [vmem:[#allocation5 + $0x8] sm:$0xff]
    %v52 = vld [vmem:[#allocation7] sm:$0xff]
    %v53 = vld [vmem:[#allocation7 + $0x8] sm:$0xff]
    %v54 = vsub.f32 %v50, %v52
    %v55 = vsub.f32 %v51, %v53
    %56 = vrot.lane.b32.xlu0 %v54, 127
    %v57 = vpop.permute.xlu0 %56
    %58 = vrot.lane.b32.xlu0 %v55, 127
    %v59 = vpop.permute.xlu0 %58
    %v60 = vlaneseq
    %v61 = vand.u32 %v60, 127
    %vm62 = vcmp.lt.s32.totalorder %v61, 127
    %v63 = vsel %vm62, %v57, %v59
    %v64 = vsel %vm62, %v59, %v57
    %v65 = vsub.f32 %v63, %v54
    %v66 = vsub.f32 %v64, %v55
    %67 = vrot.lane.b32.xlu0 %v54, 112
    %v68 = vpop.permute.xlu0 %67
    %69 = vrot.lane.b32.xlu0 %v55, 112
    %v70 = vpop.permute.xlu0 %69
    %vm71 = vcmp.lt.s32.totalorder %v61, 112
    %v72 = vsel %vm71, %v68, %v70
    %v73 = vsel %vm71, %v70, %v68
    %v74 = vsub.f32 %v72, %v54
    %v75 = vsub.f32 %v73, %v55
    %v76 = vld [vmem:[#allocation2] ss:$2 sm:$0x3]
    %s77 = scalar_lea.vmem [#allocation2], 1
    %v78 = vld [vmem:[%s77] ss:$2 sm:$0x3]
    %v79 = vand.u32 2147483647, %v65
    %v80 = vand.u32 2147483647, %v66
    %v82 = vlaneseq
    %v83 = vshrl.u32 %v82, 7
    %v84 = vsub.s32 0, %v83
    %v85 = vrot.slane %v76, %v84
    %v86 = vlaneseq
    %v87 = vshrl.u32 %v86, 7
    %v88 = vsub.s32 1, %v87
    %v89 = vrot.slane %v76, %v88
    %v92 = vmul.f32 %v79, %v85
    %v93 = vmul.f32 %v80, %v89
    %v94 = vand.u32 2147483647, %v74
    %v95 = vand.u32 2147483647, %v75
    %v97 = vlaneseq
    %v98 = vshrl.u32 %v97, 7
    %v99 = vsub.s32 0, %v98
    %v100 = vrot.slane %v78, %v99
    %v101 = vlaneseq
    %v102 = vshrl.u32 %v101, 7
    %v103 = vsub.s32 1, %v102
    %v104 = vrot.slane %v78, %v103
    %v107 = vmul.f32 %v94, %v100
    %v108 = vmul.f32 %v95, %v104
    %v109 = vadd.f32 %v92, %v107
    %v110 = vadd.f32 %v93, %v108
    %v111 = vadd.f32 %v109, %v110
    %112 = vadd.xlane.f32.xlu0 %v111
    %v113 = vpop.xlane.xlu0 %112
    %v114 = vrot.slane %v113, 4
    %v115 = vadd.f32 %v113, %v114
    %v116 = vrot.slane %v115, 2
    %v117 = vadd.f32 %v115, %v116
    %v118 = vrot.slane %v117, 1
    %v119 = vadd.f32 %v117, %v118
    %s120 = vtos %v119
    %v121 = vstv %s120
    %v122 = vadd.f32 %v121, 0.0
    %vm123 = vcmask 0
    %124 = vst.msk [vmem:[#allocation8] sm:$0x1] %vm123, %v122
    // Predicated region
    $region26: #{tpu_custom_call.1} parent=1 // pred_check
      _
    $region27: #{tpu_custom_call.1} parent=1 // pred_check_branch
      %126 = sbr.rel (0) target = $region29
    $region28: #{tpu_custom_call.1} parent=1 // pred_region
      %s128 = ssub.s32 16, 16
      %129 = vsyncadd [#allocation4], %s128
      %s131 = sshll.u32 [#allocation8], 4
      %s132 = int_to_ptr.vmem [resolvable:$true] %s131
      %134 = dma.vmem_to_hbm [thread:$0]  %s132, 16, %s3, [#allocation4]
    $region29: #{tpu_custom_call.1} parent=1 // pred_fallthru
      _
    // Predicated region
    $region30: #{tpu_custom_call.1} parent=1 // pred_check
      _
    $region31: #{tpu_custom_call.1} parent=1 // pred_check_branch
      %136 = sbr.rel (0) target = $region33
    $region32: #{tpu_custom_call.1} parent=1 // pred_region
      %137 = dma.done [#allocation4], 16
    $region33: #{tpu_custom_call.1} parent=1 // pred_fallthru
      _
    %138 = vsyncpa [#allocation3], 1
    %139 = vsyncpa [#allocation6], 1
    %140 = vsyncpa [#allocation4], 1

</llo_original>
